<compile_context>
chip_gen: v5e
topology: v5e:2x2
jax: 0.10.0
libtpu: 0.0.40
codegen_flags: <defaults>
</compile_context>

<pallas_src>
import jax
import jax.numpy as jnp
from jax.experimental import pallas as pl
from jax.experimental.pallas import tpu as pltpu


def _round_up(v, m):
    return ((v + m - 1) // m) * m


def _cdiv(a, b):
    return -(-a // b)


def _lane_pad_channels(C):
    """Smallest divisor of 128 that is >= C (C <= 128), else next multiple of 128."""
    if C >= 128:
        return _round_up(C, 128)
    d = 1
    while d < C:
        d *= 2          # divisors of 128 are exactly the powers of two <= 128
    return d


# ----------------------------------------------------------------------------
# Kernel: one streaming pass, out_tile = ReLU(x_tile @ W_bd + b_final)
#   x_tile : [tile_rows, PC]  (PC = multiple of 128, lane-dense)
#   W_bd   : [PC, PC]         block-diagonal kron(I_P, W_x_folded)
#   b_final: [1, PC]          BN + pooled-mean half of the Linear, pre-folded
# ----------------------------------------------------------------------------
def _fused_linear_bias_relu_kernel(x_ref, wbd_ref, b_ref, o_ref):
    t = jnp.dot(x_ref[...], wbd_ref[...], preferred_element_type=jnp.float32)
    o_ref[...] = jnp.maximum(t + b_ref[...], 0.0).astype(o_ref.dtype)


# ----------------------------------------------------------------------------
# Wrapper
# ----------------------------------------------------------------------------
def transition_summit_forward(x, params, *, max_tile_rows=4096, out_dtype=None):
    """Fused TransitionSummit forward (batch=None path, eval-mode BN).

    max_tile_rows: 4096 packed rows (~8 MiB double-buffered in+out) fits the
      16 MiB default scoped VMEM on v5e; 8192 is a good choice on v6e/v7x.
    out_dtype: set to jnp.bfloat16 to halve output HBM traffic if downstream
      numerics allow (MXU accumulation stays f32 either way).
    """
    N, C = x.shape
    eps = 1e-5
    f32 = jnp.float32
    hp = jax.lax.Precision.HIGHEST
    out_dtype = x.dtype if out_dtype is None else out_dtype

    W_sub = params["W_sub"].astype(f32)          # [C, C]   Lin(C, C).weight
    b_sub = params["b_sub"].astype(f32)          # [C]
    W = params["W"].astype(f32)                  # [C, 2C]  Lin(2C, C).weight
    b = params["b"].astype(f32)                  # [C]

    # ---- fold eval-mode BatchNorm1d into a per-channel scale/shift ----------
    scale = params["bn_gamma"].astype(f32) / jnp.sqrt(params["bn_var"].astype(f32) + eps)
    shift = params["bn_beta"].astype(f32) - params["bn_mean"].astype(f32) * scale

    # Split the 2C-wide Linear: x-half stays a matmul, pooled-mean half folds
    # into a bias row.
    W_x_eff = W[:, :C].T * scale[None, :]        # [C, C]   applies to x
    W_m_eff = W[:, C:].T * scale[None, :]        # [C, C]   applies to pooled row

    # ---- pooled mean + mlp_sub + pooled half of mlp -> one bias row ---------
    # Tiny [1, C] work; done in plain XLA so the hot kernel keeps a fully
    # "parallel" grid and XLA may fuse the reduction with x's producer.
    mean = jnp.mean(x.astype(f32), axis=0, keepdims=True)                    # [1, C]
    m = jax.nn.relu(jnp.dot(mean, W_sub.T, precision=hp) + b_sub[None, :])   # [1, C]
    b_final = (b * scale + shift)[None, :] + jnp.dot(m, W_m_eff, precision=hp)  # [1, C]

    # ---- lane-dense packing: P points per 128-lane row ----------------------
    C_pad = _lane_pad_channels(C)
    P = max(1, 128 // C_pad)
    PC = P * C_pad                                # always a multiple of 128

    rows = _cdiv(N, P)
    num_tiles = _cdiv(rows, max_tile_rows)
    tile_rows = _round_up(_cdiv(rows, num_tiles), 8)   # balanced: <8 pad rows/tile
    rows_padded = num_tiles * tile_rows
    n_padded = rows_padded * P

    x_pad = jnp.pad(x, ((0, n_padded - N), (0, C_pad - C)))
    x_p = x_pad.reshape(rows_padded, PC)          # free row-major view

    # Block-diagonal weight so the hot matmul reads/writes full 128-lane rows.
    W_x_pad = jnp.zeros((C_pad, C_pad), f32).at[:C, :C].set(W_x_eff)
    W_bd = jnp.kron(jnp.eye(P, dtype=f32), W_x_pad).astype(x.dtype)          # [PC, PC]
    b_final_p = jnp.tile(jnp.pad(b_final, ((0, 0), (0, C_pad - C))), (1, P))  # [1, PC]

    x_item = jnp.dtype(x.dtype).itemsize
    o_item = jnp.dtype(out_dtype).itemsize
    cost = pl.CostEstimate(
        flops=2 * rows_padded * PC * PC,
        transcendentals=0,
        bytes_accessed=rows_padded * PC * (x_item + o_item) + PC * PC * x_item + PC * 4,
    )

    out_p = pl.pallas_call(
        _fused_linear_bias_relu_kernel,
        out_shape=jax.ShapeDtypeStruct((rows_padded, PC), out_dtype),
        grid=(num_tiles,),
        in_specs=[
            pl.BlockSpec((tile_rows, PC), lambda i: (i, 0)),   # packed x tile
            pl.BlockSpec((PC, PC), lambda i: (0, 0)),          # block-diag folded weight
            pl.BlockSpec((1, PC), lambda i: (0, 0)),           # folded bias row
        ],
        out_specs=pl.BlockSpec((tile_rows, PC), lambda i: (i, 0)),
        compiler_params=pltpu.CompilerParams(
            dimension_semantics=("parallel",),
            vmem_limit_bytes=32 * 1024 * 1024,
        ),
        cost_estimate=cost,
    )(x_p, W_bd, b_final_p)

    # Padded rows hold ReLU(b_final) and padded channels hold 0; slice them
    # away immediately (keep this slice adjacent to the pallas_call).
    return out_p.reshape(n_padded, C_pad)[:N, :C]


# ----------------------------------------------------------------------------
# Pure-JAX reference (mirrors the PyTorch forward, eval-mode BN)
# ----------------------------------------------------------------------------
def transition_summit_ref(x, params):
    eps = 1e-5
    hp = jax.lax.Precision.HIGHEST
    mean = jnp.mean(x, axis=0, keepdims=True)
    m = jax.nn.relu(jnp.dot(mean, params["W_sub"].T, precision=hp) + params["b_sub"])
    m_b = jnp.broadcast_to(m, (x.shape[0], m.shape[1]))
    cat = jnp.concatenate([x, m_b], axis=1)
    t = jnp.dot(cat, params["W"].T, precision=hp) + params["b"]
    t = (t - params["bn_mean"]) / jnp.sqrt(params["bn_var"] + eps)
    t = t * params["bn_gamma"] + params["bn_beta"]
    return jax.nn.relu(t)


def init_params(key, in_channels):
    C = in_channels
    ks = jax.random.split(key, 8)
    return {
        "W_sub": jax.random.normal(ks[0], (C, C), jnp.float32) * 0.1,      # Lin(C,C).weight
        "b_sub": jax.random.normal(ks[1], (C,), jnp.float32) * 0.1,        # Lin(C,C).bias
        "W": jax.random.normal(ks[2], (C, 2 * C), jnp.float32) * 0.1,      # Lin(2C,C).weight
        "b": jax.random.normal(ks[3], (C,), jnp.float32) * 0.1,            # Lin(2C,C).bias
        "bn_gamma": 1.0 + 0.1 * jax.random.normal(ks[4], (C,), jnp.float32),
        "bn_beta": 0.1 * jax.random.normal(ks[5], (C,), jnp.float32),
        "bn_mean": 0.1 * jax.random.normal(ks[6], (C,), jnp.float32),
        "bn_var": 0.5 + jnp.abs(jax.random.normal(ks[7], (C,), jnp.float32)) * 0.2,
    }


if __name__ == "__main__":
    key = jax.random.PRNGKey(0)
    k_x, k_p, k_x2, k_p2 = jax.random.split(key, 4)

    # Tolerance note: expected mismatch is ~1e-6 (exact f32 MXU path vs a
    # HIGHEST-precision XLA reference); 2e-2 leaves headroom for pass-reduced
    # f32 matmul modes on older TPU generations.
    RTOL = ATOL = 2e-2

    # Case 1: C divides 128 -> P = 4 points packed per 128-lane row.
    N, C = 128, 32
    x = jax.random.normal(k_x, (N, C), jnp.float32)
    params = init_params(k_p, C)
    out = jax.block_until_ready(transition_summit_forward(x, params))
    ref = transition_summit_ref(x, params)
    assert out.shape == (N, C)
    assert jnp.allclose(out, ref, rtol=RTOL, atol=ATOL), float(jnp.max(jnp.abs(out - ref)))

    # Case 2: ragged N and C that does not divide 128 (48 padded -> 64, P = 2).
    N2, C2 = 203, 48
    x2 = jax.random.normal(k_x2, (N2, C2), jnp.float32)
    params2 = init_params(k_p2, C2)
    out2 = jax.block_until_ready(transition_summit_forward(x2, params2))
    ref2 = transition_summit_ref(x2, params2)
    assert out2.shape == (N2, C2)
    assert jnp.allclose(out2, ref2, rtol=RTOL, atol=ATOL), float(jnp.max(jnp.abs(out2 - ref2)))

    print("KERNEL_OK")
</pallas_src>

<mosaic_0001>
module attributes {stable_mosaic.version = 11 : i64} {
  func.func @_fused_linear_bias_relu_kernel(%arg0: i32, %arg1: memref<32x128xf32, #tpu.memory_space<vmem>>, %arg2: memref<128x128xf32, #tpu.memory_space<vmem>>, %arg3: memref<1x128xf32, #tpu.memory_space<vmem>>, %arg4: memref<32x128xf32, #tpu.memory_space<vmem>>) attributes {dimension_semantics = [#tpu.dimension_semantics<parallel>], iteration_bounds = array<i64: 1>, scalar_prefetch = 0 : i64, scratch_operands = 0 : i64, tpu.core_type = #tpu.core_type<tc>, window_params = [{transform_indices = @transform_0, window_bounds = array<i64: 32, 128>}, {pipeline_mode = #tpu.pipeline_mode<synchronous>, transform_indices = @transform_1, window_bounds = array<i64: 128, 128>}, {pipeline_mode = #tpu.pipeline_mode<synchronous>, transform_indices = @transform_2, window_bounds = array<i64: 1, 128>}, {transform_indices = @transform_3, window_bounds = array<i64: 32, 128>}]} {
    %c0 = arith.constant 0 : index
    %c0_0 = arith.constant 0 : index
    %0 = vector.load %arg1[%c0, %c0_0] : memref<32x128xf32, #tpu.memory_space<vmem>>, vector<32x128xf32>
    %c0_1 = arith.constant 0 : index
    %c0_2 = arith.constant 0 : index
    %1 = vector.load %arg2[%c0_1, %c0_2] : memref<128x128xf32, #tpu.memory_space<vmem>>, vector<128x128xf32>
    %cst = arith.constant dense<0.000000e+00> : vector<32x128xf32>
    %2 = tpu.matmul %0, %1, %cst {dimension_numbers = #tpu.dot_dimension_numbers<[1], [0], [0], [1], [0, 0, 1, 1], [], []>} : vector<32x128xf32>, vector<128x128xf32>, vector<32x128xf32> -> vector<32x128xf32>
    %c0_3 = arith.constant 0 : index
    %c0_4 = arith.constant 0 : index
    %3 = vector.load %arg3[%c0_3, %c0_4] : memref<1x128xf32, #tpu.memory_space<vmem>>, vector<1x128xf32>
    %4 = vector.broadcast %3 : vector<1x128xf32> to vector<32x128xf32>
    %5 = arith.addf %2, %4 : vector<32x128xf32>
    %cst_5 = arith.constant 0.000000e+00 : f32
    %6 = vector.broadcast %cst_5 : f32 to vector<32x128xf32>
    %7 = arith.maximumf %5, %6 : vector<32x128xf32>
    %c0_6 = arith.constant 0 : index
    %c0_7 = arith.constant 0 : index
    %8 = vector.load %arg4[%c0_6, %c0_7] : memref<32x128xf32, #tpu.memory_space<vmem>>, vector<32x128xf32>
    tpu.vector_store %arg4[%c0_6, %c0_7], %7 {strides = array<i32>} : memref<32x128xf32, #tpu.memory_space<vmem>>, vector<32x128xf32>,
    return
  }
  func.func @transform_0(%arg0: i32) -> (i32, i32) {
    %c0_i32 = arith.constant 0 : i32
    %c0_i32_0 = arith.constant 0 : i32
    return %arg0, %c0_i32 : i32, i32
  }
  func.func @transform_1(%arg0: i32) -> (i32, i32) {
    %c0_i32 = arith.constant 0 : i32
    %c0_i32_0 = arith.constant 0 : i32
    %c0_i32_1 = arith.constant 0 : i32
    return %c0_i32, %c0_i32_0 : i32, i32
  }
  func.func @transform_2(%arg0: i32) -> (i32, i32) {
    %c0_i32 = arith.constant 0 : i32
    %c0_i32_0 = arith.constant 0 : i32
    %c0_i32_1 = arith.constant 0 : i32
    return %c0_i32, %c0_i32_0 : i32, i32
  }
  func.func @transform_3(%arg0: i32) -> (i32, i32) {
    %c0_i32 = arith.constant 0 : i32
    %c0_i32_0 = arith.constant 0 : i32
    return %arg0, %c0_i32 : i32, i32
  }
}

</mosaic_0001>

<llo_original>
// kernel: tpu_custom_call.1
$region0: #{tpu_custom_call.1}
  #allocation0 [shape = 'u32[]', space=smem, size = 0x4, offset = 0x4, fixed_abs, tag = 'smem constant byte address 0x4 - core index']
  #allocation1 [shape = 'u32[72,128]{1,0:T(1,128)}', space=vmem, size = 0x9000, scoped, tag = 'internal scratch']
  %s0 = inlined_call_operand.hbm [shape: f32[32,128], index: 0, kind: input, shape index: {}]
  %s1 = inlined_call_operand.hbm [shape: f32[128,128], index: 1, kind: input, shape index: {}]
  %s2 = inlined_call_operand.vmem [shape: f32[1,128], index: 2, kind: input, shape index: {}]
  %s3 = inlined_call_operand.hbm [shape: f32[32,128], index: 3, kind: output, shape index: {}]
  %s4 = sld [smem:[#allocation0]]
  $region30: #{tpu_custom_call.1} parent=0
    _
  %s6 = ssub.s32 1, %s4
  %s7 = scalar_select 0, %s6, %s4
  $region1: #{tpu_custom_call.1} parent=0
    #allocation2 [shape = 'u8[16384]{0}', space=vmem, size = 0x4000, scoped, tag = 'input window, operand 0, single buffered']
    #allocation3 [shape = 's32[1]{0}', space=sflag, size = 0x4, scoped, tag = 'scoped memory for tpu_custom_call.1']
    #allocation4 [shape = 's32[1]{0}', space=sflag, size = 0x4, scoped, tag = 'scoped memory for tpu_custom_call.1']
    #allocation5 [shape = 'u8[65536]{0}', space=vmem, size = 0x10000, scoped, tag = 'input window, operand 1, single buffered']
    #allocation6 [shape = 's32[1]{0}', space=sflag, size = 0x4, scoped, tag = 'scoped memory for tpu_custom_call.1']
    #allocation7 [shape = 'u8[16384]{0}', space=vmem, size = 0x4000, scoped, tag = 'output window, operand 0, single buffered']
    %8 = vsyncpa [#allocation3], 0
    %9 = vsyncpa [#allocation6], 0
    %10 = vsyncpa [#allocation4], 0
    // Predicated region
    $region2: #{tpu_custom_call.1} parent=1 // pred_check
      _
    $region3: #{tpu_custom_call.1} parent=1 // pred_check_branch
      %12 = sbr.rel (0) target = $region5
    $region4: #{tpu_custom_call.1} parent=1 // pred_region
      %14 = vsyncadd [#allocation3], 0
      %s15 = sshll.u32 %s0, 4
      %s16 = int_to_ptr.hbm [resolvable:$true] %s15
      %s17 = sshll.u32 [#allocation2], 4
      %s18 = int_to_ptr.vmem [resolvable:$true] %s17
      %23 = dma.hbm_to_vmem [thread:$0]  %s16, 512, %s18, [#allocation3], 128, 128, 8
    $region5: #{tpu_custom_call.1} parent=1 // pred_fallthru
      _
    // Predicated region
    $region6: #{tpu_custom_call.1} parent=1 // pred_check
      _
    $region7: #{tpu_custom_call.1} parent=1 // pred_check_branch
      %25 = sbr.rel (0) target = $region9
    $region8: #{tpu_custom_call.1} parent=1 // pred_region
      %27 = vsyncadd [#allocation6], 0
      %s28 = sshll.u32 %s1, 4
      %s29 = int_to_ptr.hbm [resolvable:$true] %s28
      %s30 = sshll.u32 [#allocation5], 4
      %s31 = int_to_ptr.vmem [resolvable:$true] %s30
      %36 = dma.hbm_to_vmem [thread:$0]  %s29, 2048, %s31, [#allocation6], 128, 128, 8
    $region9: #{tpu_custom_call.1} parent=1 // pred_fallthru
      _
    // Predicated region
    $region10: #{tpu_custom_call.1} parent=1 // pred_check
      _
    $region11: #{tpu_custom_call.1} parent=1 // pred_check_branch
      %38 = sbr.rel (0) target = $region13
    $region12: #{tpu_custom_call.1} parent=1 // pred_region
      _
    $region13: #{tpu_custom_call.1} parent=1 // pred_fallthru
      _
    // Predicated region
    $region14: #{tpu_custom_call.1} parent=1 // pred_check
      _
    $region15: #{tpu_custom_call.1} parent=1 // pred_check_branch
      %40 = sbr.rel (0) target = $region17
    $region16: #{tpu_custom_call.1} parent=1 // pred_region
      %42 = dma.done [#allocation3], 512
    $region17: #{tpu_custom_call.1} parent=1 // pred_fallthru
      _
    // Predicated region
    $region18: #{tpu_custom_call.1} parent=1 // pred_check
      _
    $region19: #{tpu_custom_call.1} parent=1 // pred_check_branch
      %44 = sbr.rel (0) target = $region21
    $region20: #{tpu_custom_call.1} parent=1 // pred_region
      %46 = dma.done [#allocation6], 2048
    $region21: #{tpu_custom_call.1} parent=1 // pred_fallthru
      _
    %v47 = vld [vmem:[#allocation2] sm:$0xff]
    %v48 = vld [vmem:[#allocation2 + $0x8] sm:$0xff]
    %v49 = vld [vmem:[#allocation2 + $0x10] sm:$0xff]
    %v50 = vld [vmem:[#allocation2 + $0x18] sm:$0xff]
    %v51 = vld [vmem:[#allocation5] sm:$0xff]
    %v52 = vld [vmem:[#allocation5 + $0x8] sm:$0xff]
    %v53 = vld [vmem:[#allocation5 + $0x10] sm:$0xff]
    %v54 = vld [vmem:[#allocation5 + $0x18] sm:$0xff]
    %v55 = vld [vmem:[#allocation5 + $0x20] sm:$0xff]
    %v56 = vld [vmem:[#allocation5 + $0x28] sm:$0xff]
    %v57 = vld [vmem:[#allocation5 + $0x30] sm:$0xff]
    %v58 = vld [vmem:[#allocation5 + $0x38] sm:$0xff]
    %v59 = vld [vmem:[#allocation5 + $0x40] sm:$0xff]
    %v60 = vld [vmem:[#allocation5 + $0x48] sm:$0xff]
    %v61 = vld [vmem:[#allocation5 + $0x50] sm:$0xff]
    %v62 = vld [vmem:[#allocation5 + $0x58] sm:$0xff]
    %v63 = vld [vmem:[#allocation5 + $0x60] sm:$0xff]
    %v64 = vld [vmem:[#allocation5 + $0x68] sm:$0xff]
    %v65 = vld [vmem:[#allocation5 + $0x70] sm:$0xff]
    %v66 = vld [vmem:[#allocation5 + $0x78] sm:$0xff]
    %v67 = vld [vmem:[%s2] sm:$0x1]
    %v69 = vperm.slane %v67, 0
    %71 = vmatpush.msra.mxu0 %v66
    %72 = vmatpush.msra.mxu0 %v65
    %73 = vmatpush.msra.mxu0 %v64
    %74 = vmatpush.msra.mxu0 %v63
    %75 = vmatpush.msra.mxu0 %v62
    %76 = vmatpush.msra.mxu0 %v61
    %77 = vmatpush.msra.mxu0 %v60
    %78 = vmatpush.msra.mxu0 %v59
    %79 = vmatpush.msra.mxu0 %v58
    %80 = vmatpush.msra.mxu0 %v57
    %81 = vmatpush.msra.mxu0 %v56
    %82 = vmatpush.msra.mxu0 %v55
    %83 = vmatpush.msra.mxu0 %v54
    %84 = vmatpush.msra.mxu0 %v53
    %85 = vmatpush.msra.mxu0 %v52
    %86 = vmatpush.msra.mxu0 %v51
    %87 = vmatmul.f32.gmra.mxu0 %v47
    %v88 = vpop.f32.mrf.mxu0
    %v89 = vadd.f32 %v69, %v88
    %90 = vmatmul.f32.gmra.mxu0 %v48
    %v91 = vpop.f32.mrf.mxu0
    %v92 = vadd.f32 %v69, %v91
    %93 = vmatmul.f32.gmra.mxu0 %v49
    %v94 = vpop.f32.mrf.mxu0
    %v95 = vadd.f32 %v69, %v94
    %96 = vmatmul.f32.gmra.mxu0 %v50
    %v97 = vpop.f32.mrf.mxu0
    %v98 = vadd.f32 %v69, %v97
    %99 = vdwg.mxu0
    %v100 = vmax.f32 %v89, 0.0
    %v101 = vmax.f32 %v92, 0.0
    %v102 = vmax.f32 %v95, 0.0
    %v103 = vmax.f32 %v98, 0.0
    %104 = vst [vmem:[#allocation7] sm:$0xff] %v100
    %105 = vst [vmem:[#allocation7 + $0x8] sm:$0xff] %v101
    %106 = vst [vmem:[#allocation7 + $0x10] sm:$0xff] %v102
    %107 = vst [vmem:[#allocation7 + $0x18] sm:$0xff] %v103
    // Predicated region
    $region22: #{tpu_custom_call.1} parent=1 // pred_check
      _
    $region23: #{tpu_custom_call.1} parent=1 // pred_check_branch
      %109 = sbr.rel (0) target = $region25
    $region24: #{tpu_custom_call.1} parent=1 // pred_region
      %111 = vsyncadd [#allocation4], 0
      %s112 = sshll.u32 [#allocation7], 4
      %s113 = int_to_ptr.vmem [resolvable:$true] %s112
      %s114 = sshll.u32 %s3, 4
      %s115 = int_to_ptr.hbm [resolvable:$true] %s114
      %120 = dma.vmem_to_hbm [thread:$0]  %s113, 512, %s115, [#allocation4], 128, 128, 8
    $region25: #{tpu_custom_call.1} parent=1 // pred_fallthru
      _
    // Predicated region
    $region26: #{tpu_custom_call.1} parent=1 // pred_check
      _
    $region27: #{tpu_custom_call.1} parent=1 // pred_check_branch
      %122 = sbr.rel (0) target = $region29
    $region28: #{tpu_custom_call.1} parent=1 // pred_region
      %124 = dma.done [#allocation4], 512
    $region29: #{tpu_custom_call.1} parent=1 // pred_fallthru
      _
    %125 = vsyncpa [#allocation3], 1
    %126 = vsyncpa [#allocation6], 1
    %127 = vsyncpa [#allocation4], 1

</llo_original>
